<compile_context>
chip_gen: v7x
topology: tpu7x:2x2x1
jax: 0.10.0
libtpu: 0.0.40
codegen_flags: <defaults>
</compile_context>

<pallas_src>
import jax
import jax.numpy as jnp
from jax.experimental import pallas as pl
from jax.experimental.pallas import tpu as pltpu


def conv2d_3x3_pallas(x_nchw, weight_oihw, bias):
    """Valid (padding=0), stride-1 2D conv. x: (N, Cin, H, W) float32, NCHW in/out."""
    N, Cin, H, W = x_nchw.shape
    Cout, Cin_w, KH, KW = weight_oihw.shape
    assert Cin == Cin_w
    Hout, Wout = H - KH + 1, W - KW + 1

    OUTC = Hout * Wout                       # flat output columns per image
    K = Cin * KH * KW                        # GEMM contraction size (27)
    NCOLS = N * OUTC                         # batch folded into lane axis
    NCOLS_PAD = ((NCOLS + 127) // 128) * 128 # lane-dense -> unmasked stores

    # --- wrapper-side im2col (cheap XLA glue on a ~48 KiB tensor) ---------
    # K ordering is c-major, then ky, then kx, matching weight.reshape(Cout, K).
    taps = [x_nchw[:, :, ky:ky + Hout, kx:kx + Wout]        # each (N,Cin,Hout,Wout)
            for ky in range(KH) for kx in range(KW)]
    patches = jnp.stack(taps, axis=2)                        # (N, Cin, KH*KW, Hout, Wout)
    rhs = patches.transpose(1, 2, 0, 3, 4).reshape(K, NCOLS) # (K, N*OUTC)
    rhs = jnp.pad(rhs, ((0, 0), (0, NCOLS_PAD - NCOLS)))     # lane pad to 128-multiple

    w2d = weight_oihw.reshape(Cout, K)                       # (6, 27): one vreg tile
    b_col = bias.reshape(Cout, 1)

    def kernel(w_ref, x_ref, b_ref, o_ref):
        # w_ref: (Cout, K)   x_ref: (K, NCOLS_PAD)   b_ref: (Cout, 1)
        # o_ref: (Cout, NCOLS_PAD)  -- one fused GEMM for the whole batch,
        # bias broadcast on the lane axis, single lane-dense unmasked store.
        o_ref[...] = (jnp.dot(w_ref[...], x_ref[...],
                              preferred_element_type=jnp.float32)
                      + b_ref[...])

    flops = 2 * Cout * K * NCOLS
    bytes_accessed = 4 * (rhs.size + w2d.size + b_col.size + Cout * NCOLS_PAD)

    out = pl.pallas_call(
        kernel,
        out_shape=jax.ShapeDtypeStruct((Cout, NCOLS_PAD), jnp.float32),
        grid=(1,),
        in_specs=[
            pl.BlockSpec((Cout, K), lambda i: (0, 0)),
            pl.BlockSpec((K, NCOLS_PAD), lambda i: (0, 0)),
            pl.BlockSpec((Cout, 1), lambda i: (0, 0)),
        ],
        out_specs=pl.BlockSpec((Cout, NCOLS_PAD), lambda i: (0, 0)),
        compiler_params=pltpu.CompilerParams(dimension_semantics=("arbitrary",)),
        cost_estimate=pl.CostEstimate(flops=flops, transcendentals=0,
                                      bytes_accessed=bytes_accessed),
    )(w2d, rhs, b_col)

    # (Cout, N*OUTC) -> (N, Cout, Hout, Wout); tiny (~10 KiB) wrapper transpose.
    out = out[:, :NCOLS].reshape(Cout, N, Hout, Wout).transpose(1, 0, 2, 3)
    return out


if __name__ == "__main__":
    key = jax.random.PRNGKey(0)
    kx, kw, kb = jax.random.split(key, 3)

    # Tudui.conv1 = Conv2d(in_channels=3, out_channels=6, kernel_size=3, stride=1, padding=0)
    N, Cin, H, W = 2, 3, 16, 16
    Cout, KH, KW = 6, 3, 3

    x = jax.random.normal(kx, (N, Cin, H, W), dtype=jnp.float32)
    fan_in = Cin * KH * KW
    bound = 1.0 / jnp.sqrt(fan_in)
    weight = jax.random.uniform(kw, (Cout, Cin, KH, KW), jnp.float32, -bound, bound)
    bias = jax.random.uniform(kb, (Cout,), jnp.float32, -bound, bound)

    y = conv2d_3x3_pallas(x, weight, bias)
    y = jax.block_until_ready(y)

    # Reference: XLA conv with the same NCHW / OIHW semantics as PyTorch.
    y_ref = jax.lax.conv_general_dilated(
        x, weight, window_strides=(1, 1), padding="VALID",
        dimension_numbers=("NCHW", "OIHW", "NCHW"),
    ) + bias.reshape(1, Cout, 1, 1)

    assert y.shape == (N, Cout, H - 2, W - 2), y.shape
    assert jnp.allclose(y, y_ref, atol=1e-5, rtol=1e-5), "mismatch vs reference conv"

    print("KERNEL_OK")
</pallas_src>

<mosaic_0001>
module attributes {stable_mosaic.version = 11 : i64} {
  func.func @kernel(%arg0: i32, %arg1: memref<6x27xf32, #tpu.memory_space<vmem>>, %arg2: memref<27x512xf32, #tpu.memory_space<vmem>>, %arg3: memref<6x1xf32, #tpu.memory_space<vmem>>, %arg4: memref<6x512xf32, #tpu.memory_space<vmem>>) attributes {dimension_semantics = [#tpu.dimension_semantics<arbitrary>], iteration_bounds = array<i64: 1>, scalar_prefetch = 0 : i64, scratch_operands = 0 : i64, tpu.core_type = #tpu.core_type<tc>, window_params = [{pipeline_mode = #tpu.pipeline_mode<synchronous>, transform_indices = @transform_0, window_bounds = array<i64: 6, 27>}, {pipeline_mode = #tpu.pipeline_mode<synchronous>, transform_indices = @transform_1, window_bounds = array<i64: 27, 512>}, {pipeline_mode = #tpu.pipeline_mode<synchronous>, transform_indices = @transform_2, window_bounds = array<i64: 6, 1>}, {pipeline_mode = #tpu.pipeline_mode<synchronous>, transform_indices = @transform_3, window_bounds = array<i64: 6, 512>}]} {
    %c0 = arith.constant 0 : index
    %c0_0 = arith.constant 0 : index
    %0 = vector.load %arg1[%c0, %c0_0] : memref<6x27xf32, #tpu.memory_space<vmem>>, vector<6x27xf32>
    %c0_1 = arith.constant 0 : index
    %c0_2 = arith.constant 0 : index
    %1 = vector.load %arg2[%c0_1, %c0_2] : memref<27x512xf32, #tpu.memory_space<vmem>>, vector<27x512xf32>
    %cst = arith.constant dense<0.000000e+00> : vector<6x512xf32>
    %2 = tpu.matmul %0, %1, %cst {dimension_numbers = #tpu.dot_dimension_numbers<[1], [0], [0], [1], [0, 0, 1, 1], [], []>} : vector<6x27xf32>, vector<27x512xf32>, vector<6x512xf32> -> vector<6x512xf32>
    %c0_3 = arith.constant 0 : index
    %c0_4 = arith.constant 0 : index
    %3 = vector.load %arg3[%c0_3, %c0_4] : memref<6x1xf32, #tpu.memory_space<vmem>>, vector<6x1xf32>
    %4 = vector.broadcast %3 : vector<6x1xf32> to vector<6x512xf32>
    %5 = arith.addf %2, %4 : vector<6x512xf32>
    %c0_5 = arith.constant 0 : index
    %c0_6 = arith.constant 0 : index
    %6 = vector.load %arg4[%c0_5, %c0_6] : memref<6x512xf32, #tpu.memory_space<vmem>>, vector<6x512xf32>
    tpu.vector_store %arg4[%c0_5, %c0_6], %5 {strides = array<i32>} : memref<6x512xf32, #tpu.memory_space<vmem>>, vector<6x512xf32>,
    return
  }
  func.func @transform_0(%arg0: i32) -> (i32, i32) {
    %c0_i32 = arith.constant 0 : i32
    %c0_i32_0 = arith.constant 0 : i32
    %c0_i32_1 = arith.constant 0 : i32
    return %c0_i32, %c0_i32_0 : i32, i32
  }
  func.func @transform_1(%arg0: i32) -> (i32, i32) {
    %c0_i32 = arith.constant 0 : i32
    %c0_i32_0 = arith.constant 0 : i32
    %c0_i32_1 = arith.constant 0 : i32
    return %c0_i32, %c0_i32_0 : i32, i32
  }
  func.func @transform_2(%arg0: i32) -> (i32, i32) {
    %c0_i32 = arith.constant 0 : i32
    %c0_i32_0 = arith.constant 0 : i32
    %c0_i32_1 = arith.constant 0 : i32
    return %c0_i32, %c0_i32_0 : i32, i32
  }
  func.func @transform_3(%arg0: i32) -> (i32, i32) {
    %c0_i32 = arith.constant 0 : i32
    %c0_i32_0 = arith.constant 0 : i32
    %c0_i32_1 = arith.constant 0 : i32
    return %c0_i32, %c0_i32_0 : i32, i32
  }
}

</mosaic_0001>

<llo_original>
// kernel: tpu_custom_call.1
$region0: #{tpu_custom_call.1}
  #allocation0 [shape = 'u32[]', space=smem, size = 0x4, offset = 0x4, fixed_abs, tag = 'smem constant byte address 0x4 - core index']
  #allocation1 [shape = 'u32[144,128]{1,0:T(1,128)}', space=vmem, size = 0x12000, scoped, tag = 'internal scratch']
  %s0 = inlined_call_operand.vmem [shape: f32[6,27], index: 0, kind: input, shape index: {}]
  %s1 = inlined_call_operand.hbm [shape: f32[27,512], index: 1, kind: input, shape index: {}]
  %s2 = inlined_call_operand.vmem [shape: f32[6,1], index: 2, kind: input, shape index: {}]
  %s3 = inlined_call_operand.hbm [shape: f32[6,512], index: 3, kind: output, shape index: {}]
  %s4 = sld [smem:[#allocation0]]
  $region26: #{tpu_custom_call.1} parent=0
    _
  %s6 = ssub.s32 1, %s4
  %s7 = scalar_select 0, %s6, %s4
  $region1: #{tpu_custom_call.1} parent=0
    #allocation2 [shape = 'u8[65536]{0}', space=vmem, size = 0x10000, scoped, tag = 'input window, operand 1, single buffered']
    #allocation3 [shape = 's32[1]{0}', space=sflag, size = 0x4, scoped, tag = 'scoped memory for tpu_custom_call.1']
    #allocation4 [shape = 's32[1]{0}', space=sflag, size = 0x4, scoped, tag = 'scoped memory for tpu_custom_call.1']
    #allocation5 [shape = 'u8[16384]{0}', space=vmem, size = 0x4000, scoped, tag = 'output window, operand 0, single buffered']
    %8 = vsyncpa [#allocation3], 0
    %9 = vsyncpa [#allocation4], 0
    // Predicated region
    $region2: #{tpu_custom_call.1} parent=1 // pred_check
      _
    $region3: #{tpu_custom_call.1} parent=1 // pred_check_branch
      %11 = sbr.rel (0) target = $region5
    $region4: #{tpu_custom_call.1} parent=1 // pred_region
      _
    $region5: #{tpu_custom_call.1} parent=1 // pred_fallthru
      _
    // Predicated region
    $region6: #{tpu_custom_call.1} parent=1 // pred_check
      _
    $region7: #{tpu_custom_call.1} parent=1 // pred_check_branch
      %13 = sbr.rel (0) target = $region9
    $region8: #{tpu_custom_call.1} parent=1 // pred_region
      %s15 = ssub.s32 2048, 2048
      %16 = vsyncadd [#allocation3], %s15
      %s17 = sshll.u32 [#allocation2], 4
      %s18 = int_to_ptr.vmem [resolvable:$true] %s17
      %23 = dma.hbm_to_vmem [thread:$0]  %s1, 2048, %s18, [#allocation3], 512, 512, 32
    $region9: #{tpu_custom_call.1} parent=1 // pred_fallthru
      _
    // Predicated region
    $region10: #{tpu_custom_call.1} parent=1 // pred_check
      _
    $region11: #{tpu_custom_call.1} parent=1 // pred_check_branch
      %25 = sbr.rel (0) target = $region13
    $region12: #{tpu_custom_call.1} parent=1 // pred_region
      _
    $region13: #{tpu_custom_call.1} parent=1 // pred_fallthru
      _
    // Predicated region
    $region14: #{tpu_custom_call.1} parent=1 // pred_check
      _
    $region15: #{tpu_custom_call.1} parent=1 // pred_check_branch
      %27 = sbr.rel (0) target = $region17
    $region16: #{tpu_custom_call.1} parent=1 // pred_region
      %28 = dma.done [#allocation3], 2048
    $region17: #{tpu_custom_call.1} parent=1 // pred_fallthru
      _
    %v29 = vld [vmem:[%s0] sm:$0x3f]
    %v30 = vld [vmem:[#allocation2] sm:$0xff]
    %v31 = vld [vmem:[#allocation2 + $0x8] sm:$0xff]
    %v32 = vld [vmem:[#allocation2 + $0x10] sm:$0xff]
    %v33 = vld [vmem:[#allocation2 + $0x18] sm:$0xff]
    %v34 = vld [vmem:[#allocation2 + $0x20] sm:$0xff]
    %v35 = vld [vmem:[#allocation2 + $0x28] sm:$0xff]
    %v36 = vld [vmem:[#allocation2 + $0x30] sm:$0xff]
    %v37 = vld [vmem:[#allocation2 + $0x38] sm:$0xff]
    %v38 = vld [vmem:[#allocation2 + $0x40] sm:$0xff]
    %v39 = vld [vmem:[#allocation2 + $0x48] sm:$0xff]
    %v40 = vld [vmem:[#allocation2 + $0x50] sm:$0xff]
    %v41 = vld [vmem:[#allocation2 + $0x58] sm:$0xff]
    %v42 = vld [vmem:[#allocation2 + $0x60] sm:$0x7]
    %v43 = vld [vmem:[#allocation2 + $0x68] sm:$0x7]
    %v44 = vld [vmem:[#allocation2 + $0x70] sm:$0x7]
    %v45 = vld [vmem:[#allocation2 + $0x78] sm:$0x7]
    %v46 = vld [vmem:[%s2] sm:$0x3f]
    %48 = vset.pattern.permute.xlu0 0
    %49 = vperm.xlu0 %48, %v46
    %v50 = vpop.permute.xlu0 %49
    %vm52 = vcmask 220160
    %v54 = vsel %vm52, %v29, 0
    %vm56 = vcmask 1042432
    %v58 = vsel %vm56, %v42, 0
    %v61 = vsel %vm56, %v43, 0
    %v64 = vsel %vm56, %v44, 0
    %v67 = vsel %vm56, %v45, 0
    %69 = vmatprep.subr.mxu0 %v31
    %70 = vmatpush1.msra.mxu0 %v30
    %71 = vmatprep.subr.mxu0 %v35
    %72 = vmatpush1.msra.mxu0 %v34
    %73 = vmatprep.subr.mxu0 %v39
    %74 = vmatpush1.msra.mxu0 %v38
    %75 = vmatprep.subr.mxu0 %v61
    %76 = vmatpush1.msra.mxu0 %v58
    %77 = vmatprep.subr.mxu0 0.0
    %78 = vmatpush1.msra.mxu0 0.0
    %79 = vmatprep.subr.mxu0 0.0
    %80 = vmatpush1.msra.mxu0 0.0
    %81 = vmatprep.subr.mxu0 0.0
    %82 = vmatpush1.msra.mxu0 0.0
    %83 = vmatprep.subr.mxu0 0.0
    %84 = vmatpush1.msra.mxu0 0.0
    %85 = vmatprep.subr.mxu0 0.0
    %86 = vmatpush1.msra.mxu0 0.0
    %87 = vmatprep.subr.mxu0 0.0
    %88 = vmatpush1.msra.mxu0 0.0
    %89 = vmatprep.subr.mxu0 0.0
    %90 = vmatpush1.msra.mxu0 0.0
    %91 = vmatprep.subr.mxu0 0.0
    %92 = vmatpush1.msra.mxu0 0.0
    %93 = vmatprep.subr.mxu0 0.0
    %94 = vmatpush1.msra.mxu0 0.0
    %95 = vmatprep.subr.mxu0 0.0
    %96 = vmatpush1.msra.mxu0 0.0
    %97 = vmatprep.subr.mxu0 0.0
    %98 = vmatpush1.msra.mxu0 0.0
    %99 = vmatprep.subr.mxu0 0.0
    %100 = vmatpush1.msra.mxu0 0.0
    %101 = vmatprep.subr.mxu0 0.0
    %102 = vmatpush1.msra.mxu0 0.0
    %103 = vmatprep.subr.mxu0 0.0
    %104 = vmatpush1.msra.mxu0 0.0
    %105 = vmatprep.subr.mxu0 0.0
    %106 = vmatpush1.msra.mxu0 0.0
    %107 = vmatprep.subr.mxu0 0.0
    %108 = vmatpush1.msra.mxu0 0.0
    %109 = vmatprep.subr.mxu0 0.0
    %110 = vmatpush1.msra.mxu0 0.0
    %111 = vmatprep.subr.mxu0 0.0
    %112 = vmatpush1.msra.mxu0 0.0
    %113 = vmatprep.subr.mxu0 0.0
    %114 = vmatpush1.msra.mxu0 0.0
    %115 = vmatprep.subr.mxu0 0.0
    %116 = vmatpush1.msra.mxu0 0.0
    %117 = vmatprep.subr.mxu0 0.0
    %118 = vmatpush1.msra.mxu0 0.0
    %119 = vmatprep.subr.mxu0 0.0
    %120 = vmatpush1.msra.mxu0 0.0
    %121 = vmatprep.subr.mxu0 0.0
    %122 = vmatpush1.msra.mxu0 0.0
    %123 = vmatprep.subr.mxu0 0.0
    %124 = vmatpush1.msra.mxu0 0.0
    %125 = vmatprep.subr.mxu0 0.0
    %126 = vmatpush1.msra.mxu0 0.0
    %127 = vmatprep.subr.mxu0 0.0
    %128 = vmatpush1.msra.mxu0 0.0
    %129 = vmatprep.subr.mxu0 0.0
    %130 = vmatpush1.msra.mxu0 0.0
    %131 = vmatprep.subr.mxu0 0.0
    %132 = vmatpush1.msra.mxu0 0.0
    %133 = vmatprep.mubr.f32.mxu0 0.0
    %134 = vmatmul.mubr.f32.gmra.mrb[0].mxu0 %v54
    %v135 = vpop.f32.mrb[0].mxu0
    %v136 = vadd.f32 %v50, %v135
    %v137 = vpop.f32.mrb[0].mxu0
    %v138 = vadd.f32 %v50, %v137
    %139 = vdwg.mxu0
    %140 = vmatprep.subr.mxu0 %v33
    %141 = vmatpush1.msra.mxu0 %v32
    %142 = vmatprep.subr.mxu0 %v37
    %143 = vmatpush1.msra.mxu0 %v36
    %144 = vmatprep.subr.mxu0 %v41
    %145 = vmatpush1.msra.mxu0 %v40
    %146 = vmatprep.subr.mxu0 %v67
    %147 = vmatpush1.msra.mxu0 %v64
    %148 = vmatprep.subr.mxu0 0.0
    %149 = vmatpush1.msra.mxu0 0.0
    %150 = vmatprep.subr.mxu0 0.0
    %151 = vmatpush1.msra.mxu0 0.0
    %152 = vmatprep.subr.mxu0 0.0
    %153 = vmatpush1.msra.mxu0 0.0
    %154 = vmatprep.subr.mxu0 0.0
    %155 = vmatpush1.msra.mxu0 0.0
    %156 = vmatprep.subr.mxu0 0.0
    %157 = vmatpush1.msra.mxu0 0.0
    %158 = vmatprep.subr.mxu0 0.0
    %159 = vmatpush1.msra.mxu0 0.0
    %160 = vmatprep.subr.mxu0 0.0
    %161 = vmatpush1.msra.mxu0 0.0
    %162 = vmatprep.subr.mxu0 0.0
    %163 = vmatpush1.msra.mxu0 0.0
    %164 = vmatprep.subr.mxu0 0.0
    %165 = vmatpush1.msra.mxu0 0.0
    %166 = vmatprep.subr.mxu0 0.0
    %167 = vmatpush1.msra.mxu0 0.0
    %168 = vmatprep.subr.mxu0 0.0
    %169 = vmatpush1.msra.mxu0 0.0
    %170 = vmatprep.subr.mxu0 0.0
    %171 = vmatpush1.msra.mxu0 0.0
    %172 = vmatprep.subr.mxu0 0.0
    %173 = vmatpush1.msra.mxu0 0.0
    %174 = vmatprep.subr.mxu0 0.0
    %175 = vmatpush1.msra.mxu0 0.0
    %176 = vmatprep.subr.mxu0 0.0
    %177 = vmatpush1.msra.mxu0 0.0
    %178 = vmatprep.subr.mxu0 0.0
    %179 = vmatpush1.msra.mxu0 0.0
    %180 = vmatprep.subr.mxu0 0.0
    %181 = vmatpush1.msra.mxu0 0.0
    %182 = vmatprep.subr.mxu0 0.0
    %183 = vmatpush1.msra.mxu0 0.0
    %184 = vmatprep.subr.mxu0 0.0
    %185 = vmatpush1.msra.mxu0 0.0
    %186 = vmatprep.subr.mxu0 0.0
    %187 = vmatpush1.msra.mxu0 0.0
    %188 = vmatprep.subr.mxu0 0.0
    %189 = vmatpush1.msra.mxu0 0.0
    %190 = vmatprep.subr.mxu0 0.0
    %191 = vmatpush1.msra.mxu0 0.0
    %192 = vmatprep.subr.mxu0 0.0
    %193 = vmatpush1.msra.mxu0 0.0
    %194 = vmatprep.subr.mxu0 0.0
    %195 = vmatpush1.msra.mxu0 0.0
    %196 = vmatprep.subr.mxu0 0.0
    %197 = vmatpush1.msra.mxu0 0.0
    %198 = vmatprep.subr.mxu0 0.0
    %199 = vmatpush1.msra.mxu0 0.0
    %200 = vmatprep.subr.mxu0 0.0
    %201 = vmatpush1.msra.mxu0 0.0
    %202 = vmatprep.subr.mxu0 0.0
    %203 = vmatpush1.msra.mxu0 0.0
    %204 = vmatprep.mubr.f32.mxu0 0.0
    %205 = vmatmul.mubr.f32.gmra.mrb[0].mxu0 %v54
    %v206 = vpop.f32.mrb[0].mxu0
    %v207 = vadd.f32 %v50, %v206
    %v208 = vpop.f32.mrb[0].mxu0
    %v209 = vadd.f32 %v50, %v208
    %210 = vdwg.mxu0
    %211 = vst [vmem:[#allocation5] sm:$0x3f] %v136
    %212 = vst [vmem:[#allocation5 + $0x8] sm:$0x3f] %v138
    %213 = vst [vmem:[#allocation5 + $0x10] sm:$0x3f] %v207
    %214 = vst [vmem:[#allocation5 + $0x18] sm:$0x3f] %v209
    // Predicated region
    $region18: #{tpu_custom_call.1} parent=1 // pred_check
      _
    $region19: #{tpu_custom_call.1} parent=1 // pred_check_branch
      %216 = sbr.rel (0) target = $region21
    $region20: #{tpu_custom_call.1} parent=1 // pred_region
      %s218 = ssub.s32 512, 512
      %219 = vsyncadd [#allocation4], %s218
      %s221 = sshll.u32 [#allocation5], 4
      %s222 = int_to_ptr.vmem [resolvable:$true] %s221
      %224 = dma.vmem_to_hbm [thread:$0]  %s222, 512, %s3, [#allocation4]
    $region21: #{tpu_custom_call.1} parent=1 // pred_fallthru
      _
    // Predicated region
    $region22: #{tpu_custom_call.1} parent=1 // pred_check
      _
    $region23: #{tpu_custom_call.1} parent=1 // pred_check_branch
      %226 = sbr.rel (0) target = $region25
    $region24: #{tpu_custom_call.1} parent=1 // pred_region
      %227 = dma.done [#allocation4], 512
    $region25: #{tpu_custom_call.1} parent=1 // pred_fallthru
      _
    %228 = vsyncpa [#allocation3], 1
    %229 = vsyncpa [#allocation4], 1

</llo_original>
